<compile_context>
chip_gen: v7x
topology: tpu7x:2x2x1
jax: 0.10.0
libtpu: 0.0.40
codegen_flags: <defaults>
</compile_context>

<pallas_src>
import jax
import jax.numpy as jnp
from jax.experimental import pallas as pl
from jax.experimental.pallas import tpu as pltpu


_FAST_PATH_BYTES = 4 << 20          # single-block cutoff (in+out = 8 MiB VMEM)
_TARGET_TILE_BYTES = 2 << 20        # ~2 MiB per streamed block
_LANE_CANDIDATES = (4096, 2048, 1024, 512, 256, 128)
_DEFAULT_LANE = 1024


def _exp_kernel(x_ref, o_ref):
    # Elementwise exp on the current VMEM tile (lowers to the EUP).
    o_ref[...] = jnp.exp(x_ref[...])


def _cost(num_elems, itemsize):
    return pl.CostEstimate(
        flops=0,
        transcendentals=int(num_elems),
        bytes_accessed=int(2 * num_elems * itemsize),
    )


def _exp_single_block(x2d):
    # Whole array as one VMEM block: no grid, no per-step overhead, no padding.
    return pl.pallas_call(
        _exp_kernel,
        out_shape=jax.ShapeDtypeStruct(x2d.shape, x2d.dtype),
        input_output_aliases={0: 0},
        cost_estimate=_cost(x2d.size, x2d.dtype.itemsize),
    )(x2d)


def _exp_tiled(x2d, tile_rows, lane):
    rows = x2d.shape[0]
    grid = (pl.cdiv(rows, tile_rows),)
    return pl.pallas_call(
        _exp_kernel,
        out_shape=jax.ShapeDtypeStruct(x2d.shape, x2d.dtype),
        grid_spec=pltpu.PrefetchScalarGridSpec(
            num_scalar_prefetch=0,
            grid=grid,
            in_specs=[pl.BlockSpec((tile_rows, lane), lambda i: (i, 0))],
            out_specs=pl.BlockSpec((tile_rows, lane), lambda i: (i, 0)),
        ),
        input_output_aliases={0: 0},
        cost_estimate=_cost(x2d.size, x2d.dtype.itemsize),
        compiler_params=pltpu.CompilerParams(
            # 1-D row grid, independent blocks: megacore-shards on v7x.
            dimension_semantics=("parallel",)),
    )(x2d)


def _pick_lane(n):
    for lane in _LANE_CANDIDATES:
        if n % lane == 0:
            return lane
    return None


def _pick_tile_rows(lane, itemsize):
    rows = _TARGET_TILE_BYTES // (lane * itemsize)
    rows = (rows // 32) * 32        # multiple of 32 sublanes: valid for all dtypes
    return max(rows, 32)


def exponential(x):
    """JAX/Pallas equivalent of Exponential.forward (torch.exp)."""
    orig_shape = x.shape
    n = x.size
    if n == 0:
        return x

    itemsize = jnp.dtype(x.dtype).itemsize
    lane = _pick_lane(n)

    # ---- small-input fast path: one block, zero padding, zero grid overhead
    if n * itemsize <= _FAST_PATH_BYTES:
        if lane is not None:
            x2d = x.reshape(-1, lane)                # lane-dense view (free)
        elif x.ndim >= 2:
            x2d = x.reshape(-1, orig_shape[-1])
        else:
            x2d = x.reshape(1, -1)
        return _exp_single_block(x2d).reshape(orig_shape)

    # ---- large-input streaming path
    flat = x.reshape(-1)
    padded = False
    if lane is None:
        # Rare: element count not a multiple of 128 -> tiny tail pad (one copy).
        lane = _DEFAULT_LANE
        pad = (-n) % lane
        flat = jnp.pad(flat, (0, pad))
        padded = True

    rows = flat.size // lane
    tile_rows = _pick_tile_rows(lane, itemsize)
    y = _exp_tiled(flat.reshape(rows, lane), tile_rows, lane)
    y = y.reshape(-1)
    if padded:
        y = y[:n]
    return y.reshape(orig_shape)


if __name__ == "__main__":
    key = jax.random.PRNGKey(0)

    # Primary small case consistent with an MLP activation: (batch=2, hidden=32).
    x_small = jax.random.normal(key, (2, 32), dtype=jnp.float32)
    y_small = exponential(x_small)
    jax.block_until_ready(y_small)
    assert y_small.shape == x_small.shape and y_small.dtype == x_small.dtype
    assert jnp.allclose(y_small, jnp.exp(x_small), rtol=1e-6, atol=1e-6)

    # Exercise the tiled streaming path (lane-dense view, ragged last block).
    k1, k2 = jax.random.split(key)
    x_big = jax.random.normal(k1, (2000, 768), dtype=jnp.float32)     # ~5.9 MiB
    y_big = exponential(x_big)
    jax.block_until_ready(y_big)
    assert jnp.allclose(y_big, jnp.exp(x_big), rtol=1e-6, atol=1e-6)

    # Exercise the rare padded fallback (element count not a multiple of 128).
    x_odd = jax.random.normal(k2, (1025, 1027), dtype=jnp.float32)    # ~4.0 MiB
    y_odd = exponential(x_odd)
    jax.block_until_ready(y_odd)
    assert jnp.allclose(y_odd, jnp.exp(x_odd), rtol=1e-6, atol=1e-6)

    print("KERNEL_OK")
</pallas_src>

<mosaic_0001>
module attributes {stable_mosaic.version = 11 : i64} {
  func.func @_exp_kernel(%arg0: memref<2x32xf32, #tpu.memory_space<vmem>>, %arg1: memref<2x32xf32, #tpu.memory_space<vmem>>) attributes {dimension_semantics = [], scalar_prefetch = 0 : i64, scratch_operands = 0 : i64, tpu.core_type = #tpu.core_type<tc>} {
    %c0 = arith.constant 0 : index
    %c0_0 = arith.constant 0 : index
    %0 = vector.load %arg0[%c0, %c0_0] : memref<2x32xf32, #tpu.memory_space<vmem>>, vector<2x32xf32>
    %1 = math.exp %0 : vector<2x32xf32>
    %c0_1 = arith.constant 0 : index
    %c0_2 = arith.constant 0 : index
    %2 = vector.load %arg1[%c0_1, %c0_2] : memref<2x32xf32, #tpu.memory_space<vmem>>, vector<2x32xf32>
    tpu.vector_store %arg1[%c0_1, %c0_2], %1 {strides = array<i32>} : memref<2x32xf32, #tpu.memory_space<vmem>>, vector<2x32xf32>,
    return
  }
}

</mosaic_0001>

<llo_original>
// kernel: tpu_custom_call.1
$region0: #{tpu_custom_call.1}
  #allocation0 [shape = 'u32[]', space=smem, size = 0x4, offset = 0x4, fixed_abs, tag = 'smem constant byte address 0x4 - core index']
  #allocation1 [shape = 'u32[144,128]{1,0:T(1,128)}', space=vmem, size = 0x12000, scoped, tag = 'internal scratch']
  %s0 = inlined_call_operand.hbm [shape: f32[2,32], index: 0, kind: input, shape index: {}, may-alias: {0,1}]
  %s1 = inlined_call_operand.hbm [shape: f32[2,32], index: 1, kind: output, shape index: {}, may-alias: {0,1}]
  %s2 = sld [smem:[#allocation0]]
  $region18: #{tpu_custom_call.1} parent=0
    _
  %s4 = ssub.s32 1, %s2
  %s5 = scalar_select 0, %s4, %s2
  $region1: #{tpu_custom_call.1} parent=0
    #allocation2 [shape = 'u8[1024]{0}', space=vmem, size = 0x400, scoped, tag = 'input window, operand 0, single buffered']
    #allocation3 [shape = 's32[1]{0}', space=sflag, size = 0x4, scoped, tag = 'scoped memory for tpu_custom_call.1']
    #allocation4 [shape = 's32[1]{0}', space=sflag, size = 0x4, scoped, tag = 'scoped memory for tpu_custom_call.1']
    #allocation5 [shape = 'u8[1024]{0}', space=vmem, size = 0x400, scoped, tag = 'output window, operand 0, single buffered']
    %6 = vsyncpa [#allocation3], 0
    %7 = vsyncpa [#allocation4], 0
    // Predicated region
    $region2: #{tpu_custom_call.1} parent=1 // pred_check
      _
    $region3: #{tpu_custom_call.1} parent=1 // pred_check_branch
      %9 = sbr.rel (0) target = $region5
    $region4: #{tpu_custom_call.1} parent=1 // pred_region
      %s11 = ssub.s32 32, 32
      %12 = vsyncadd [#allocation3], %s11
      %s14 = sshll.u32 [#allocation2], 4
      %s15 = int_to_ptr.vmem [resolvable:$true] %s14
      %17 = dma.hbm_to_vmem [thread:$0]  %s0, 32, %s15, [#allocation3]
    $region5: #{tpu_custom_call.1} parent=1 // pred_fallthru
      _
    // Predicated region
    $region6: #{tpu_custom_call.1} parent=1 // pred_check
      _
    $region7: #{tpu_custom_call.1} parent=1 // pred_check_branch
      %19 = sbr.rel (0) target = $region9
    $region8: #{tpu_custom_call.1} parent=1 // pred_region
      %20 = dma.done [#allocation3], 32
    $region9: #{tpu_custom_call.1} parent=1 // pred_fallthru
      _
    %v21 = vld [vmem:[#allocation2] sm:$0x3]
    %v22 = vmul.f32 %v21, 1.442695
    %v23 = vpow.pop %v22
    %vm24 = vcmask 254976
    %25 = vst.msk [vmem:[#allocation5] sm:$0x3] %vm24, %v23
    // Predicated region
    $region10: #{tpu_custom_call.1} parent=1 // pred_check
      _
    $region11: #{tpu_custom_call.1} parent=1 // pred_check_branch
      %27 = sbr.rel (0) target = $region13
    $region12: #{tpu_custom_call.1} parent=1 // pred_region
      %s29 = ssub.s32 32, 32
      %30 = vsyncadd [#allocation4], %s29
      %s32 = sshll.u32 [#allocation5], 4
      %s33 = int_to_ptr.vmem [resolvable:$true] %s32
      %35 = dma.vmem_to_hbm [thread:$0]  %s33, 32, %s1, [#allocation4]
    $region13: #{tpu_custom_call.1} parent=1 // pred_fallthru
      _
    // Predicated region
    $region14: #{tpu_custom_call.1} parent=1 // pred_check
      _
    $region15: #{tpu_custom_call.1} parent=1 // pred_check_branch
      %37 = sbr.rel (0) target = $region17
    $region16: #{tpu_custom_call.1} parent=1 // pred_region
      %38 = dma.done [#allocation4], 32
    $region17: #{tpu_custom_call.1} parent=1 // pred_fallthru
      _
    %39 = vsyncpa [#allocation3], 1
    %40 = vsyncpa [#allocation4], 1

</llo_original>
